<compile_context>
chip_gen: v7x
topology: tpu7x:2x2x1
jax: 0.10.0
libtpu: 0.0.40
codegen_flags: <defaults>
</compile_context>

<pallas_src>
import functools

import jax
import jax.numpy as jnp
from jax.experimental import pallas as pl
from jax.experimental.pallas import tpu as pltpu

LANE = 128        # lane width of the packed weight slab
HID = 64          # hidden width of the MLP
NEG_SLOPE = 0.01  # nn.LeakyReLU default


def _round_up(x, m):
    return (x + m - 1) // m * m


def _leaky_relu(x, slope=NEG_SLOPE):
    return jnp.where(x > 0, x, slope * x)


def _slab_layout(obs_size):
    """Row offsets of each parameter inside the packed (rows, 128) slab."""
    w1_rows = _round_up(obs_size, 8)      # w1 stored at its real (padded-to-8) K
    b1_off = w1_rows
    w2_off = b1_off + 8
    b2_off = w2_off + LANE
    w3_off = b2_off + 8
    b3_off = w3_off + LANE
    rows = b3_off + 8                     # obs=8 -> 288 rows (72 KiB in bf16)
    return dict(w1_rows=w1_rows, b1=b1_off, w2=w2_off, b2=b2_off,
                w3=w3_off, b3=b3_off, rows=rows)


def pack_params(params, dtype=jnp.bfloat16):
    """Pack (w1,b1,w2,b2,w3,b3) -- weights (in,out), biases (1,out) -- into one
    zero-padded (rows, 128) slab. Padded rows/cols are zero, so padded lanes of
    every intermediate stay exactly 0 through leaky-relu."""
    w1, b1, w2, b2, w3, b3 = params
    L = _slab_layout(w1.shape[0])
    slab = jnp.zeros((L["rows"], LANE), dtype)

    def put_w(s, off, w):
        return s.at[off:off + w.shape[0], :w.shape[1]].set(w.astype(dtype))

    def put_b(s, off, b):
        return s.at[off, :b.shape[-1]].set(b.astype(dtype).reshape(-1))

    slab = put_w(slab, 0, w1)
    slab = put_b(slab, L["b1"], b1)
    slab = put_w(slab, L["w2"], w2)
    slab = put_b(slab, L["b2"], b2)
    slab = put_w(slab, L["w3"], w3)
    slab = put_b(slab, L["b3"], b3)
    return slab


# ----------------------------------------------------------------------------
# Kernels
# ----------------------------------------------------------------------------

def _q_tile(x_ref, p_ref, *, obs_size, layout):
    """Shared MLP body: returns (TB, 128) f32 Q tile (lanes >= action are 0)."""
    L = layout
    cdt = p_ref.dtype  # bf16 compute operands, f32 MXU accumulation
    x = x_ref[...].astype(cdt)                                   # (TB, obs)

    h = jnp.dot(x, p_ref[0:obs_size, :], preferred_element_type=jnp.float32)
    h = _leaky_relu(h + p_ref[L["b1"]:L["b1"] + 1, :].astype(jnp.float32))

    h = jnp.dot(h.astype(cdt), p_ref[L["w2"]:L["w2"] + LANE, :],
                preferred_element_type=jnp.float32)
    h = _leaky_relu(h + p_ref[L["b2"]:L["b2"] + 1, :].astype(jnp.float32))

    q = jnp.dot(h.astype(cdt), p_ref[L["w3"]:L["w3"] + LANE, :],
                preferred_element_type=jnp.float32)
    q = q + p_ref[L["b3"]:L["b3"] + 1, :].astype(jnp.float32)
    return q


def _forward_kernel(x_ref, p_ref, o_ref, *, obs_size, action_size, layout):
    q = _q_tile(x_ref, p_ref, obs_size=obs_size, layout=layout)
    o_ref[...] = q[:, :action_size].astype(o_ref.dtype)


def _act_kernel(x_ref, p_ref, a_ref, *, obs_size, action_size, layout):
    q = _q_tile(x_ref, p_ref, obs_size=obs_size, layout=layout)
    lane = jax.lax.broadcasted_iota(jnp.int32, q.shape, 1)
    neg = jnp.float32(jnp.finfo(jnp.float32).min)
    qm = jnp.where(lane < action_size, q, neg)
    m = jnp.max(qm, axis=-1, keepdims=True)
    lane_f = lane.astype(jnp.float32)
    # argmax with lowest-index tie-break (matches torch/jnp argmax).
    idx = jnp.min(jnp.where(qm >= m, lane_f, jnp.float32(LANE)),
                  axis=-1, keepdims=True)
    a_ref[...] = idx.astype(jnp.int32)


# ----------------------------------------------------------------------------
# Wrappers
# ----------------------------------------------------------------------------

def _grid_setup(B, block_b, num_cores):
    B8 = _round_up(B, 8)
    TB = min(block_b, B8)
    if num_cores > 1:
        # Keep >=num_cores grid steps so "parallel" shards across TensorCores
        # (v7x has 2 TCs; leave num_cores=1 on v5e/v6e).
        TB = min(TB, _round_up(pl.cdiv(B8, num_cores), 8))
    TB = max(TB, 8)
    B_pad = _round_up(B8, TB)
    return TB, B_pad


def _common_call(kernel_fn, out_width, out_dtype, x, packed_params, *,
                 action_size, block_b, num_cores):
    B, obs = x.shape
    layout = _slab_layout(obs)
    assert packed_params.shape == (layout["rows"], LANE), "bad slab shape"
    TB, B_pad = _grid_setup(B, block_b, num_cores)

    x = x.astype(jnp.float32)
    if B_pad != B:                              # batch-only pad: 4*obs B per row
        x = jnp.pad(x, ((0, B_pad - B), (0, 0)))

    kernel = functools.partial(kernel_fn, obs_size=obs,
                               action_size=action_size, layout=layout)
    param_bytes = packed_params.size * packed_params.dtype.itemsize
    flops = 2 * B * (obs * HID + HID * HID + HID * action_size)
    bytes_accessed = B * obs * 4 + param_bytes + B * out_width * 4

    out = pl.pallas_call(
        kernel,
        out_shape=jax.ShapeDtypeStruct((B_pad, out_width), out_dtype),
        grid_spec=pltpu.PrefetchScalarGridSpec(
            num_scalar_prefetch=0,
            grid=(B_pad // TB,),
            in_specs=[
                pl.BlockSpec((TB, obs), lambda i: (i, 0)),
                # Constant index_map -> slab fetched once, resident over grid.
                pl.BlockSpec((layout["rows"], LANE), lambda i: (0, 0)),
            ],
            out_specs=pl.BlockSpec((TB, out_width), lambda i: (i, 0)),
        ),
        compiler_params=pltpu.CompilerParams(
            dimension_semantics=("parallel",)),
        cost_estimate=pl.CostEstimate(
            flops=flops, transcendentals=0, bytes_accessed=bytes_accessed),
    )(x, packed_params)
    return out if B_pad == B else out[:B]


@functools.partial(jax.jit, static_argnames=("action_size", "block_b", "num_cores"))
def deep_q_lunar_forward(x, packed_params, *, action_size, block_b=1024,
                         num_cores=1):
    """Q-values: x (B, obs) float -> (B, action_size) float32."""
    return _common_call(_forward_kernel, action_size, jnp.float32,
                        x, packed_params, action_size=action_size,
                        block_b=block_b, num_cores=num_cores)


@functools.partial(jax.jit, static_argnames=("action_size", "block_b", "num_cores"))
def deep_q_lunar_act(x, packed_params, *, action_size, block_b=1024,
                     num_cores=1):
    """Greedy actions (fused in-kernel argmax): x (B, obs) -> (B,) int32."""
    out = _common_call(_act_kernel, 1, jnp.int32,
                       x, packed_params, action_size=action_size,
                       block_b=block_b, num_cores=num_cores)
    return out[:, 0]


# ----------------------------------------------------------------------------
# Params + references
# ----------------------------------------------------------------------------

def init_params(key, obs_size, action_size, hidden=HID):
    """Mirror nn.Linear's U(-1/sqrt(fan_in), 1/sqrt(fan_in)).
    Weights returned as (in, out) — transpose of PyTorch's (out, in)."""
    def linear(k, fan_in, fan_out):
        kw, kb = jax.random.split(k)
        bound = 1.0 / jnp.sqrt(fan_in)
        w = jax.random.uniform(kw, (fan_in, fan_out), jnp.float32, -bound, bound)
        b = jax.random.uniform(kb, (1, fan_out), jnp.float32, -bound, bound)
        return w, b

    k1, k2, k3 = jax.random.split(key, 3)
    w1, b1 = linear(k1, obs_size, hidden)
    w2, b2 = linear(k2, hidden, hidden)
    w3, b3 = linear(k3, hidden, action_size)
    return (w1, b1, w2, b2, w3, b3)


def reference_forward(x, params):
    """Full-precision (f32) reference."""
    w1, b1, w2, b2, w3, b3 = params
    h1 = _leaky_relu(x @ w1 + b1)
    h2 = _leaky_relu(h1 @ w2 + b2)
    return h2 @ w3 + b3


def reference_forward_bf16(x, params):
    """Reference that mirrors the kernel's bf16-operand / f32-accumulate path."""
    w1, b1, w2, b2, w3, b3 = params
    c = lambda a: a.astype(jnp.bfloat16)
    f32 = jnp.float32
    h = _leaky_relu(jnp.dot(c(x), c(w1), preferred_element_type=f32)
                    + c(b1).astype(f32))
    h = _leaky_relu(jnp.dot(c(h), c(w2), preferred_element_type=f32)
                    + c(b2).astype(f32))
    return jnp.dot(c(h), c(w3), preferred_element_type=f32) + c(b3).astype(f32)


if __name__ == "__main__":
    # LunarLander-v2: obs_size=8, action_size=4
    obs_size, action_size = 8, 4

    key = jax.random.PRNGKey(0)
    k_params, k_x1, k_x2 = jax.random.split(key, 3)
    params = init_params(k_params, obs_size, action_size)
    packed = pack_params(params)          # (288, 128) bf16 slab, ~72 KiB

    # --- Small inference-style batch (single grid step) -----------------------
    x_small = jax.random.normal(k_x1, (8, obs_size), jnp.float32)
    q_small = jax.block_until_ready(
        deep_q_lunar_forward(x_small, packed, action_size=action_size))
    assert q_small.shape == (8, action_size)
    # Tight check vs a bf16-operand reference (same numerics path as kernel).
    assert jnp.allclose(q_small, reference_forward_bf16(x_small, params),
                        atol=5e-3, rtol=5e-3), "small-batch mismatch vs bf16 ref"
    # Loose check vs the f32 reference (bf16 operand rounding, see TODO above).
    assert jnp.allclose(q_small, reference_forward(x_small, params),
                        atol=1e-1, rtol=1e-1), "small-batch mismatch vs f32 ref"

    # --- Fused-argmax act path -------------------------------------------------
    a_small = jax.block_until_ready(
        deep_q_lunar_act(x_small, packed, action_size=action_size))
    assert a_small.shape == (8,)
    assert jnp.array_equal(a_small, jnp.argmax(q_small, axis=-1)), \
        "fused argmax disagrees with argmax of kernel Q-values"

    # --- Replay-buffer-style batch: non-multiple of 8/tile, multi-step grid,
    #     num_cores=2 keeps >=2 grid steps (v7x TensorCore sharding) ------------
    x_big = jax.random.normal(k_x2, (300, obs_size), jnp.float32)
    q_big = jax.block_until_ready(
        deep_q_lunar_forward(x_big, packed, action_size=action_size,
                             block_b=128, num_cores=2))
    assert q_big.shape == (300, action_size)
    assert jnp.allclose(q_big, reference_forward_bf16(x_big, params),
                        atol=5e-3, rtol=5e-3), "large-batch mismatch vs bf16 ref"
    assert jnp.allclose(q_big, reference_forward(x_big, params),
                        atol=1e-1, rtol=1e-1), "large-batch mismatch vs f32 ref"

    print("KERNEL_OK")
</pallas_src>

<mosaic_0001>
module attributes {stable_mosaic.version = 11 : i64} {
  func.func @_forward_kernel(%arg0: i32, %arg1: memref<8x8xf32, #tpu.memory_space<vmem>>, %arg2: memref<288x128xbf16, #tpu.memory_space<vmem>>, %arg3: memref<8x4xf32, #tpu.memory_space<vmem>>) attributes {dimension_semantics = [#tpu.dimension_semantics<parallel>], iteration_bounds = array<i64: 1>, scalar_prefetch = 0 : i64, scratch_operands = 0 : i64, tpu.core_type = #tpu.core_type<tc>, window_params = [{transform_indices = @transform_0, window_bounds = array<i64: 8, 8>}, {pipeline_mode = #tpu.pipeline_mode<synchronous>, transform_indices = @transform_1, window_bounds = array<i64: 288, 128>}, {transform_indices = @transform_2, window_bounds = array<i64: 8, 4>}]} {
    %c0 = arith.constant 0 : index
    %c0_0 = arith.constant 0 : index
    %0 = vector.load %arg1[%c0, %c0_0] : memref<8x8xf32, #tpu.memory_space<vmem>>, vector<8x8xf32>
    %1 = arith.truncf %0 : vector<8x8xf32> to vector<8x8xbf16>
    %c0_1 = arith.constant 0 : index
    %c0_2 = arith.constant 0 : index
    %2 = vector.load %arg2[%c0_1, %c0_2] : memref<288x128xbf16, #tpu.memory_space<vmem>>, vector<8x128xbf16>
    %cst = arith.constant dense<0.000000e+00> : vector<8x128xf32>
    %3 = tpu.matmul %1, %2, %cst {dimension_numbers = #tpu.dot_dimension_numbers<[1], [0], [0], [1], [0, 0, 1, 1], [], []>} : vector<8x8xbf16>, vector<8x128xbf16>, vector<8x128xf32> -> vector<8x128xf32>
    %c8 = arith.constant 8 : index
    %c0_3 = arith.constant 0 : index
    %4 = vector.load %arg2[%c8, %c0_3] : memref<288x128xbf16, #tpu.memory_space<vmem>>, vector<1x128xbf16>
    %5 = arith.extf %4 : vector<1x128xbf16> to vector<1x128xf32>
    %6 = vector.broadcast %5 : vector<1x128xf32> to vector<8x128xf32>
    %7 = arith.addf %3, %6 : vector<8x128xf32>
    %cst_4 = arith.constant 0.000000e+00 : f32
    %8 = vector.broadcast %cst_4 : f32 to vector<8x128xf32>
    %9 = arith.cmpf ogt, %7, %8 : vector<8x128xf32>
    %cst_5 = arith.constant 0.00999999977 : f32
    %10 = vector.broadcast %cst_5 : f32 to vector<8x128xf32>
    %11 = arith.mulf %10, %7 : vector<8x128xf32>
    %12 = arith.select %9, %7, %11 : vector<8x128xi1>, vector<8x128xf32>
    %13 = arith.truncf %12 : vector<8x128xf32> to vector<8x128xbf16>
    %c16 = arith.constant 16 : index
    %c0_6 = arith.constant 0 : index
    %14 = vector.load %arg2[%c16, %c0_6] : memref<288x128xbf16, #tpu.memory_space<vmem>>, vector<128x128xbf16>
    %cst_7 = arith.constant dense<0.000000e+00> : vector<8x128xf32>
    %15 = tpu.matmul %13, %14, %cst_7 {dimension_numbers = #tpu.dot_dimension_numbers<[1], [0], [0], [1], [0, 0, 1, 1], [], []>} : vector<8x128xbf16>, vector<128x128xbf16>, vector<8x128xf32> -> vector<8x128xf32>
    %c144 = arith.constant 144 : index
    %c0_8 = arith.constant 0 : index
    %16 = vector.load %arg2[%c144, %c0_8] : memref<288x128xbf16, #tpu.memory_space<vmem>>, vector<1x128xbf16>
    %17 = arith.extf %16 : vector<1x128xbf16> to vector<1x128xf32>
    %18 = vector.broadcast %17 : vector<1x128xf32> to vector<8x128xf32>
    %19 = arith.addf %15, %18 : vector<8x128xf32>
    %cst_9 = arith.constant 0.000000e+00 : f32
    %20 = vector.broadcast %cst_9 : f32 to vector<8x128xf32>
    %21 = arith.cmpf ogt, %19, %20 : vector<8x128xf32>
    %cst_10 = arith.constant 0.00999999977 : f32
    %22 = vector.broadcast %cst_10 : f32 to vector<8x128xf32>
    %23 = arith.mulf %22, %19 : vector<8x128xf32>
    %24 = arith.select %21, %19, %23 : vector<8x128xi1>, vector<8x128xf32>
    %25 = arith.truncf %24 : vector<8x128xf32> to vector<8x128xbf16>
    %c152 = arith.constant 152 : index
    %c0_11 = arith.constant 0 : index
    %26 = vector.load %arg2[%c152, %c0_11] : memref<288x128xbf16, #tpu.memory_space<vmem>>, vector<128x128xbf16>
    %cst_12 = arith.constant dense<0.000000e+00> : vector<8x128xf32>
    %27 = tpu.matmul %25, %26, %cst_12 {dimension_numbers = #tpu.dot_dimension_numbers<[1], [0], [0], [1], [0, 0, 1, 1], [], []>} : vector<8x128xbf16>, vector<128x128xbf16>, vector<8x128xf32> -> vector<8x128xf32>
    %c280 = arith.constant 280 : index
    %c0_13 = arith.constant 0 : index
    %28 = vector.load %arg2[%c280, %c0_13] : memref<288x128xbf16, #tpu.memory_space<vmem>>, vector<1x128xbf16>
    %29 = arith.extf %28 : vector<1x128xbf16> to vector<1x128xf32>
    %30 = vector.broadcast %29 : vector<1x128xf32> to vector<8x128xf32>
    %31 = arith.addf %27, %30 : vector<8x128xf32>
    %32 = vector.extract_strided_slice %31 {offsets = [0, 0], sizes = [8, 4], strides = [1, 1]} : vector<8x128xf32> to vector<8x4xf32>
    %c0_14 = arith.constant 0 : index
    %c0_15 = arith.constant 0 : index
    %33 = vector.load %arg3[%c0_14, %c0_15] : memref<8x4xf32, #tpu.memory_space<vmem>>, vector<8x4xf32>
    tpu.vector_store %arg3[%c0_14, %c0_15], %32 {strides = array<i32>} : memref<8x4xf32, #tpu.memory_space<vmem>>, vector<8x4xf32>,
    return
  }
  func.func @transform_0(%arg0: i32) -> (i32, i32) {
    %c0_i32 = arith.constant 0 : i32
    %c0_i32_0 = arith.constant 0 : i32
    return %arg0, %c0_i32 : i32, i32
  }
  func.func @transform_1(%arg0: i32) -> (i32, i32) {
    %c0_i32 = arith.constant 0 : i32
    %c0_i32_0 = arith.constant 0 : i32
    %c0_i32_1 = arith.constant 0 : i32
    return %c0_i32, %c0_i32_0 : i32, i32
  }
  func.func @transform_2(%arg0: i32) -> (i32, i32) {
    %c0_i32 = arith.constant 0 : i32
    %c0_i32_0 = arith.constant 0 : i32
    return %arg0, %c0_i32 : i32, i32
  }
}

</mosaic_0001>

<llo_original>
// kernel: deep_q_lunar_forward.1
$region0: #{deep_q_lunar_forward.1}
  #allocation0 [shape = 'u32[]', space=smem, size = 0x4, offset = 0x4, fixed_abs, tag = 'smem constant byte address 0x4 - core index']
  #allocation1 [shape = 'u32[144,128]{1,0:T(1,128)}', space=vmem, size = 0x12000, scoped, tag = 'internal scratch']
  %s0 = inlined_call_operand.hbm [shape: f32[8,8], index: 0, kind: input, shape index: {}]
  %s1 = inlined_call_operand.hbm [shape: bf16[288,128], index: 1, kind: input, shape index: {}]
  %s2 = inlined_call_operand.vmem [shape: f32[8,4], index: 2, kind: output, shape index: {}]
  %s3 = sld [smem:[#allocation0]]
  $region26: #{deep_q_lunar_forward.1} parent=0
    _
  %s5 = ssub.s32 1, %s3
  %s6 = scalar_select 0, %s5, %s3
  $region1: #{deep_q_lunar_forward.1} parent=0
    #allocation2 [shape = 'u8[4096]{0}', space=vmem, size = 0x1000, scoped, tag = 'input window, operand 0, single buffered']
    #allocation3 [shape = 's32[1]{0}', space=sflag, size = 0x4, scoped, tag = 'scoped memory for deep_q_lunar_forward.1']
    #allocation4 [shape = 'u8[73728]{0}', space=vmem, size = 0x12000, scoped, tag = 'input window, operand 1, single buffered']
    #allocation5 [shape = 's32[1]{0}', space=sflag, size = 0x4, scoped, tag = 'scoped memory for deep_q_lunar_forward.1']
    %7 = vsyncpa [#allocation3], 0
    %8 = vsyncpa [#allocation5], 0
    // Predicated region
    $region2: #{deep_q_lunar_forward.1} parent=1 // pred_check
      _
    $region3: #{deep_q_lunar_forward.1} parent=1 // pred_check_branch
      %10 = sbr.rel (0) target = $region5
    $region4: #{deep_q_lunar_forward.1} parent=1 // pred_region
      %s12 = ssub.s32 128, 128
      %13 = vsyncadd [#allocation3], %s12
      %s15 = sshll.u32 [#allocation2], 4
      %s16 = int_to_ptr.vmem [resolvable:$true] %s15
      %18 = dma.hbm_to_vmem [thread:$0]  %s0, 128, %s16, [#allocation3]
    $region5: #{deep_q_lunar_forward.1} parent=1 // pred_fallthru
      _
    // Predicated region
    $region6: #{deep_q_lunar_forward.1} parent=1 // pred_check
      _
    $region7: #{deep_q_lunar_forward.1} parent=1 // pred_check_branch
      %20 = sbr.rel (0) target = $region9
    $region8: #{deep_q_lunar_forward.1} parent=1 // pred_region
      %s22 = ssub.s32 2304, 2304
      %23 = vsyncadd [#allocation5], %s22
      %s24 = sshll.u32 [#allocation4], 4
      %s25 = int_to_ptr.vmem [resolvable:$true] %s24
      %30 = dma.hbm_to_vmem [thread:$0]  %s1, 2304, %s25, [#allocation5], 64, 64, 4
    $region9: #{deep_q_lunar_forward.1} parent=1 // pred_fallthru
      _
    // Predicated region
    $region10: #{deep_q_lunar_forward.1} parent=1 // pred_check
      _
    $region11: #{deep_q_lunar_forward.1} parent=1 // pred_check_branch
      %32 = sbr.rel (0) target = $region13
    $region12: #{deep_q_lunar_forward.1} parent=1 // pred_region
      %33 = dma.done [#allocation3], 128
    $region13: #{deep_q_lunar_forward.1} parent=1 // pred_fallthru
      _
    // Predicated region
    $region14: #{deep_q_lunar_forward.1} parent=1 // pred_check
      _
    $region15: #{deep_q_lunar_forward.1} parent=1 // pred_check_branch
      %35 = sbr.rel (0) target = $region17
    $region16: #{deep_q_lunar_forward.1} parent=1 // pred_region
      %36 = dma.done [#allocation5], 2304
    $region17: #{deep_q_lunar_forward.1} parent=1 // pred_fallthru
      _
    %v38 = vld [vmem:[#allocation2] sm:$0xff]
    %v39 = vpack.c.bf16 %v38, %v38
    %v40 = vld [vmem:[#allocation4] sm:$0xf]
    %v41 = vld [vmem:[#allocation4 + $0x4] sm:$0x1]
    %v42 = vunpack.c.l.bf16 %v41
    %v43 = vlaneseq
    %v44 = vshrl.u32 %v43, 7
    %v45 = vsub.s32 0, %v44
    %v46 = vrot.slane %v42, %v45
    %vm47 = vcmask 64512
    %v49 = vsel %vm47, %v39, 0
    %vm51 = vcmask 1043456
    %v53 = vsel %vm51, %v40, 0
    %55 = vmatprep.subr.bf16.mxu0 0
    %56 = vmatpush1.bf16.msra.mxu0 %v53
    %57 = vmatprep.subr.bf16.mxu0 0
    %58 = vmatpush1.bf16.msra.mxu0 0
    %59 = vmatprep.subr.bf16.mxu0 0
    %60 = vmatpush1.bf16.msra.mxu0 0
    %61 = vmatprep.subr.bf16.mxu0 0
    %62 = vmatpush1.bf16.msra.mxu0 0
    %63 = vmatprep.subr.bf16.mxu0 0
    %64 = vmatpush1.bf16.msra.mxu0 0
    %65 = vmatprep.subr.bf16.mxu0 0
    %66 = vmatpush1.bf16.msra.mxu0 0
    %67 = vmatprep.subr.bf16.mxu0 0
    %68 = vmatpush1.bf16.msra.mxu0 0
    %69 = vmatprep.subr.bf16.mxu0 0
    %70 = vmatpush1.bf16.msra.mxu0 0
    %71 = vmatprep.subr.bf16.mxu0 0
    %72 = vmatpush1.bf16.msra.mxu0 0
    %73 = vmatprep.subr.bf16.mxu0 0
    %74 = vmatpush1.bf16.msra.mxu0 0
    %75 = vmatprep.subr.bf16.mxu0 0
    %76 = vmatpush1.bf16.msra.mxu0 0
    %77 = vmatprep.subr.bf16.mxu0 0
    %78 = vmatpush1.bf16.msra.mxu0 0
    %79 = vmatprep.subr.bf16.mxu0 0
    %80 = vmatpush1.bf16.msra.mxu0 0
    %81 = vmatprep.subr.bf16.mxu0 0
    %82 = vmatpush1.bf16.msra.mxu0 0
    %83 = vmatprep.subr.bf16.mxu0 0
    %84 = vmatpush1.bf16.msra.mxu0 0
    %85 = vmatprep.subr.bf16.mxu0 0
    %86 = vmatpush1.bf16.msra.mxu0 0
    %87 = vmatprep.mubr.bf16.mxu0 0
    %88 = vmatmul.mubr.bf16.gmra.mrb[0].mxu0 %v49
    %v89 = vpop.f32.mrb[0].mxu0
    %v90 = vadd.f32 %v46, %v89
    %v91 = vpop.f32.mrb[0].mxu0
    %v92 = vpop.f32.mrb[0].mxu0
    %v93 = vpop.f32.mrb[0].mxu0
    %94 = vdwg.mxu0
    %vm95 = vcmp.gt.f32.partialorder %v90, 0.0
    %v96 = vmul.f32 %v90, 0.01
    %v97 = vsel %vm95, %v90, %v96
    %v98 = vpack.c.bf16 %v97, %v97
    %v99 = vld [vmem:[#allocation4 + $0x8] sm:$0xf]
    %v100 = vld [vmem:[#allocation4 + $0xc] sm:$0xf]
    %v101 = vld [vmem:[#allocation4 + $0x10] sm:$0xf]
    %v102 = vld [vmem:[#allocation4 + $0x14] sm:$0xf]
    %v103 = vld [vmem:[#allocation4 + $0x18] sm:$0xf]
    %v104 = vld [vmem:[#allocation4 + $0x1c] sm:$0xf]
    %v105 = vld [vmem:[#allocation4 + $0x20] sm:$0xf]
    %v106 = vld [vmem:[#allocation4 + $0x24] sm:$0xf]
    %v107 = vld [vmem:[#allocation4 + $0x28] sm:$0xf]
    %v108 = vld [vmem:[#allocation4 + $0x2c] sm:$0xf]
    %v109 = vld [vmem:[#allocation4 + $0x30] sm:$0xf]
    %v110 = vld [vmem:[#allocation4 + $0x34] sm:$0xf]
    %v111 = vld [vmem:[#allocation4 + $0x38] sm:$0xf]
    %v112 = vld [vmem:[#allocation4 + $0x3c] sm:$0xf]
    %v113 = vld [vmem:[#allocation4 + $0x40] sm:$0xf]
    %v114 = vld [vmem:[#allocation4 + $0x44] sm:$0xf]
    %v115 = vld [vmem:[#allocation4 + $0x48] sm:$0x1]
    %v116 = vunpack.c.l.bf16 %v115
    %v117 = vlaneseq
    %v118 = vshrl.u32 %v117, 7
    %v119 = vsub.s32 0, %v118
    %v120 = vrot.slane %v116, %v119
    %v137 = vunpack.c.l.b16 %v99
    %v138 = vunpack.c.l.b16 %v100
    %v139 = vunpack.c.l.b16 %v101
    %v140 = vunpack.c.l.b16 %v102
    %v141 = vunpack.c.l.b16 %v103
    %v142 = vunpack.c.l.b16 %v104
    %v143 = vunpack.c.l.b16 %v105
    %v144 = vunpack.c.l.b16 %v106
    %v145 = vunpack.c.l.b16 %v107
    %v146 = vunpack.c.l.b16 %v108
    %v147 = vunpack.c.l.b16 %v109
    %v148 = vunpack.c.l.b16 %v110
    %v149 = vunpack.c.l.b16 %v111
    %v150 = vunpack.c.l.b16 %v112
    %v151 = vunpack.c.l.b16 %v113
    %v152 = vunpack.c.l.b16 %v114
    %v153 = vpack.c.b16 %v138, %v137
    %v154 = vpack.c.b16 %v140, %v139
    %v155 = vpack.c.b16 %v142, %v141
    %v156 = vpack.c.b16 %v144, %v143
    %v157 = vpack.c.b16 %v146, %v145
    %v158 = vpack.c.b16 %v148, %v147
    %v159 = vpack.c.b16 %v150, %v149
    %v160 = vpack.c.b16 %v152, %v151
    %169 = vmatprep.subr.bf16.mxu0 0
    %170 = vmatpush1.bf16.msra.mxu0 %v153
    %171 = vmatprep.subr.bf16.mxu0 0
    %172 = vmatpush1.bf16.msra.mxu0 %v154
    %173 = vmatprep.subr.bf16.mxu0 0
    %174 = vmatpush1.bf16.msra.mxu0 %v155
    %175 = vmatprep.subr.bf16.mxu0 0
    %176 = vmatpush1.bf16.msra.mxu0 %v156
    %177 = vmatprep.subr.bf16.mxu0 0
    %178 = vmatpush1.bf16.msra.mxu0 %v157
    %179 = vmatprep.subr.bf16.mxu0 0
    %180 = vmatpush1.bf16.msra.mxu0 %v158
    %181 = vmatprep.subr.bf16.mxu0 0
    %182 = vmatpush1.bf16.msra.mxu0 %v159
    %183 = vmatprep.subr.bf16.mxu0 0
    %184 = vmatpush1.bf16.msra.mxu0 %v160
    %185 = vmatprep.subr.bf16.mxu0 0
    %186 = vmatpush1.bf16.msra.mxu0 0
    %187 = vmatprep.subr.bf16.mxu0 0
    %188 = vmatpush1.bf16.msra.mxu0 0
    %189 = vmatprep.subr.bf16.mxu0 0
    %190 = vmatpush1.bf16.msra.mxu0 0
    %191 = vmatprep.subr.bf16.mxu0 0
    %192 = vmatpush1.bf16.msra.mxu0 0
    %193 = vmatprep.subr.bf16.mxu0 0
    %194 = vmatpush1.bf16.msra.mxu0 0
    %195 = vmatprep.subr.bf16.mxu0 0
    %196 = vmatpush1.bf16.msra.mxu0 0
    %197 = vmatprep.subr.bf16.mxu0 0
    %198 = vmatpush1.bf16.msra.mxu0 0
    %199 = vmatprep.subr.bf16.mxu0 0
    %200 = vmatpush1.bf16.msra.mxu0 0
    %201 = vmatprep.mubr.bf16.mxu0 0
    %202 = vmatmul.mubr.bf16.gmra.mrb[0].mxu0 %v98
    %v203 = vpop.f32.mrb[0].mxu0
    %v204 = vadd.f32 %v120, %v203
    %v205 = vpop.f32.mrb[0].mxu0
    %v206 = vpop.f32.mrb[0].mxu0
    %v207 = vpop.f32.mrb[0].mxu0
    %208 = vdwg.mxu0
    %vm209 = vcmp.gt.f32.partialorder %v204, 0.0
    %v210 = vmul.f32 %v204, 0.01
    %v211 = vsel %vm209, %v204, %v210
    %v212 = vpack.c.bf16 %v211, %v211
    %v213 = vld [vmem:[#allocation4 + $0x4c] sm:$0xf]
    %v214 = vld [vmem:[#allocation4 + $0x50] sm:$0xf]
    %v215 = vld [vmem:[#allocation4 + $0x54] sm:$0xf]
    %v216 = vld [vmem:[#allocation4 + $0x58] sm:$0xf]
    %v217 = vld [vmem:[#allocation4 + $0x5c] sm:$0xf]
    %v218 = vld [vmem:[#allocation4 + $0x60] sm:$0xf]
    %v219 = vld [vmem:[#allocation4 + $0x64] sm:$0xf]
    %v220 = vld [vmem:[#allocation4 + $0x68] sm:$0xf]
    %v221 = vld [vmem:[#allocation4 + $0x6c] sm:$0xf]
    %v222 = vld [vmem:[#allocation4 + $0x70] sm:$0xf]
    %v223 = vld [vmem:[#allocation4 + $0x74] sm:$0xf]
    %v224 = vld [vmem:[#allocation4 + $0x78] sm:$0xf]
    %v225 = vld [vmem:[#allocation4 + $0x7c] sm:$0xf]
    %v226 = vld [vmem:[#allocation4 + $0x80] sm:$0xf]
    %v227 = vld [vmem:[#allocation4 + $0x84] sm:$0xf]
    %v228 = vld [vmem:[#allocation4 + $0x88] sm:$0xf]
    %v229 = vld [vmem:[#allocation4 + $0x8c] sm:$0x1]
    %v230 = vunpack.c.l.bf16 %v229
    %v231 = vlaneseq
    %v232 = vshrl.u32 %v231, 7
    %v233 = vsub.s32 0, %v232
    %v234 = vrot.slane %v230, %v233
    %v251 = vunpack.c.l.b16 %v213
    %v252 = vunpack.c.l.b16 %v214
    %v253 = vunpack.c.l.b16 %v215
    %v254 = vunpack.c.l.b16 %v216
    %v255 = vunpack.c.l.b16 %v217
    %v256 = vunpack.c.l.b16 %v218
    %v257 = vunpack.c.l.b16 %v219
    %v258 = vunpack.c.l.b16 %v220
    %v259 = vunpack.c.l.b16 %v221
    %v260 = vunpack.c.l.b16 %v222
    %v261 = vunpack.c.l.b16 %v223
    %v262 = vunpack.c.l.b16 %v224
    %v263 = vunpack.c.l.b16 %v225
    %v264 = vunpack.c.l.b16 %v226
    %v265 = vunpack.c.l.b16 %v227
    %v266 = vunpack.c.l.b16 %v228
    %v267 = vpack.c.b16 %v252, %v251
    %v268 = vpack.c.b16 %v254, %v253
    %v269 = vpack.c.b16 %v256, %v255
    %v270 = vpack.c.b16 %v258, %v257
    %v271 = vpack.c.b16 %v260, %v259
    %v272 = vpack.c.b16 %v262, %v261
    %v273 = vpack.c.b16 %v264, %v263
    %v274 = vpack.c.b16 %v266, %v265
    %283 = vmatprep.subr.bf16.mxu0 0
    %284 = vmatpush1.bf16.msra.mxu0 %v267
    %285 = vmatprep.subr.bf16.mxu0 0
    %286 = vmatpush1.bf16.msra.mxu0 %v268
    %287 = vmatprep.subr.bf16.mxu0 0
    %288 = vmatpush1.bf16.msra.mxu0 %v269
    %289 = vmatprep.subr.bf16.mxu0 0
    %290 = vmatpush1.bf16.msra.mxu0 %v270
    %291 = vmatprep.subr.bf16.mxu0 0
    %292 = vmatpush1.bf16.msra.mxu0 %v271
    %293 = vmatprep.subr.bf16.mxu0 0
    %294 = vmatpush1.bf16.msra.mxu0 %v272
    %295 = vmatprep.subr.bf16.mxu0 0
    %296 = vmatpush1.bf16.msra.mxu0 %v273
    %297 = vmatprep.subr.bf16.mxu0 0
    %298 = vmatpush1.bf16.msra.mxu0 %v274
    %299 = vmatprep.subr.bf16.mxu0 0
    %300 = vmatpush1.bf16.msra.mxu0 0
    %301 = vmatprep.subr.bf16.mxu0 0
    %302 = vmatpush1.bf16.msra.mxu0 0
    %303 = vmatprep.subr.bf16.mxu0 0
    %304 = vmatpush1.bf16.msra.mxu0 0
    %305 = vmatprep.subr.bf16.mxu0 0
    %306 = vmatpush1.bf16.msra.mxu0 0
    %307 = vmatprep.subr.bf16.mxu0 0
    %308 = vmatpush1.bf16.msra.mxu0 0
    %309 = vmatprep.subr.bf16.mxu0 0
    %310 = vmatpush1.bf16.msra.mxu0 0
    %311 = vmatprep.subr.bf16.mxu0 0
    %312 = vmatpush1.bf16.msra.mxu0 0
    %313 = vmatprep.subr.bf16.mxu0 0
    %314 = vmatpush1.bf16.msra.mxu0 0
    %315 = vmatprep.mubr.bf16.mxu0 0
    %316 = vmatmul.mubr.bf16.gmra.mrb[0].mxu0 %v212
    %v317 = vpop.f32.mrb[0].mxu0
    %v318 = vadd.f32 %v234, %v317
    %v319 = vpop.f32.mrb[0].mxu0
    %v320 = vpop.f32.mrb[0].mxu0
    %v321 = vpop.f32.mrb[0].mxu0
    %322 = vdwg.mxu0
    %vm323 = vcmask 31744
    %324 = vst.msk [vmem:[%s2] sm:$0xff] %vm323, %v318
    // Predicated region
    $region18: #{deep_q_lunar_forward.1} parent=1 // pred_check
      _
    $region19: #{deep_q_lunar_forward.1} parent=1 // pred_check_branch
      %326 = sbr.rel (0) target = $region21
    $region20: #{deep_q_lunar_forward.1} parent=1 // pred_region
      _
    $region21: #{deep_q_lunar_forward.1} parent=1 // pred_fallthru
      _
    // Predicated region
    $region22: #{deep_q_lunar_forward.1} parent=1 // pred_check
      _
    $region23: #{deep_q_lunar_forward.1} parent=1 // pred_check_branch
      %328 = sbr.rel (0) target = $region25
    $region24: #{deep_q_lunar_forward.1} parent=1 // pred_region
      _
    $region25: #{deep_q_lunar_forward.1} parent=1 // pred_fallthru
      _
    %329 = vsyncpa [#allocation3], 1
    %330 = vsyncpa [#allocation5], 1

</llo_original>
